<compile_context>
chip_gen: v7x
topology: tpu7x:2x2x1
jax: 0.10.0
libtpu: 0.0.40
codegen_flags: <defaults>
</compile_context>

<pallas_src>
import math

import jax
import jax.numpy as jnp
from jax import lax
from jax.experimental import pallas as pl
from jax.experimental.pallas import tpu as pltpu

_INV_SQRT2 = 1.0 / math.sqrt(2.0)


def _hypermlp_kernel(x_ref, w_ref, b_ref, o_ref):
    # x_ref: (tm, K)   w_ref: (K, tn)   b_ref: (1, tn)   o_ref: (tm, tn)
    y = jnp.dot(x_ref[...], w_ref[...], preferred_element_type=jnp.float32)
    y = y + b_ref[...]
    # Exact GELU: 0.5 * y * (1 + erf(y / sqrt(2)))
    o_ref[...] = (0.5 * y * (1.0 + lax.erf(y * _INV_SQRT2))).astype(o_ref.dtype)


def hypermlp_forward(x, weight, bias):
    """x: (..., in_shape); weight: (embed_dim, in_shape); bias: (embed_dim,)."""
    *lead, k = x.shape
    k = int(k)
    n = int(weight.shape[0])
    m = 1
    for d in lead:
        m *= int(d)

    x2d = x.reshape(m, k)                      # leading-dim collapse: free view
    w_kn = weight.T                            # (K, N): tiny one-time transpose
    b2d = bias.reshape(1, n).astype(jnp.float32)

    # ---- generation-aware VMEM budget --------------------------------------
    try:
        vmem_cap = int(pltpu.get_tpu_info().vmem_capacity_bytes)
    except Exception:
        vmem_cap = 64 << 20                    # conservative fallback (v7x per-TC)
    budget = (vmem_cap * 3) // 8               # 24 MiB on v7x, 48 MiB on v5e/v6e
    vmem_limit = (vmem_cap * 3) // 4           # 48 MiB on v7x, 96 MiB on v5e/v6e

    bpe = 4                                    # f32 bytes per element
    w_bytes = 2 * bpe * (k * n + n)            # W + bias (worst-case double-buffered)

    if w_bytes <= budget // 4:
        # ---- Path A: W + bias fully VMEM-resident, M-only grid --------------
        per_row = 2 * bpe * (k + n)            # double-buffered x row + out row
        tm_cap = min(2048, max(8, (budget - w_bytes) // per_row))
        if m <= tm_cap:
            tm = m                             # block == full dim: always legal
        elif tm_cap >= 256:
            tm = (tm_cap // 256) * 256         # keep MXU / store lanes well fed
        else:
            tm = (tm_cap // 8) * 8
        grid = (pl.cdiv(m, tm),)
        in_specs = [
            pl.BlockSpec((tm, k), lambda i: (i, 0)),   # streamed x rows
            pl.BlockSpec((k, n), lambda i: (0, 0)),    # resident weight
            pl.BlockSpec((1, n), lambda i: (0, 0)),    # resident bias
        ]
        out_specs = pl.BlockSpec((tm, n), lambda i: (i, 0))
        dim_sem = ("parallel",)
    else:
        # ---- Path B: N tiled too; M OUTER so the x tile stays resident ------
        tn = min(1024, 128 * pl.cdiv(n, 128))
        tm = 512 if m > 512 else m
        while 2 * bpe * (tm * k + k * tn + tm * tn + tn) > budget:
            # shrink the larger VMEM contributor first; never starve the MXU
            if tm * (k + tn) >= tn * (k + tm) and tm > 128:
                tm = max(128, ((tm // 2) // 8) * 8)
            elif tn > 128:
                tn -= 128
            else:
                break
        grid = (pl.cdiv(m, tm), pl.cdiv(n, tn))        # M outer, N inner
        in_specs = [
            pl.BlockSpec((tm, k), lambda i, j: (i, 0)),   # resident across N tiles
            pl.BlockSpec((k, tn), lambda i, j: (0, j)),
            pl.BlockSpec((1, tn), lambda i, j: (0, j)),
        ]
        out_specs = pl.BlockSpec((tm, tn), lambda i, j: (i, j))
        dim_sem = ("parallel", "parallel")

    cost = pl.CostEstimate(
        flops=2 * m * k * n,
        transcendentals=m * n,
        bytes_accessed=bpe * (m * k + k * n + m * n + n),
    )

    out2d = pl.pallas_call(
        _hypermlp_kernel,
        out_shape=jax.ShapeDtypeStruct((m, n), x.dtype),
        grid_spec=pltpu.PrefetchScalarGridSpec(
            num_scalar_prefetch=0,
            grid=grid,
            in_specs=in_specs,
            out_specs=out_specs,
        ),
        compiler_params=pltpu.CompilerParams(
            dimension_semantics=dim_sem,
            vmem_limit_bytes=vmem_limit,
        ),
        cost_estimate=cost,
    )(x2d, w_kn, b2d)

    return out2d.reshape(*lead, n)


def _reference(x, weight, bias):
    y = jnp.einsum("...k,nk->...n", x, weight,
                   preferred_element_type=jnp.float32) + bias
    return 0.5 * y * (1.0 + lax.erf(y * _INV_SQRT2))


if __name__ == "__main__":
    # Small shapes consistent with the module: (batch, in_chans, img_size, img_size);
    # nn.Linear acts on the LAST axis, so in_shape == img_size here.
    batch, in_chans, img_size = 2, 4, 16
    in_shape = img_size
    embed_dim = 32

    key = jax.random.PRNGKey(0)
    kx, kw, kb = jax.random.split(key, 3)

    x = jax.random.normal(kx, (batch, in_chans, img_size, img_size), jnp.float32)
    # nn.Linear-style init: U(-1/sqrt(K), 1/sqrt(K))
    bound = 1.0 / math.sqrt(in_shape)
    weight = jax.random.uniform(kw, (embed_dim, in_shape), jnp.float32, -bound, bound)
    bias = jax.random.uniform(kb, (embed_dim,), jnp.float32, -bound, bound)

    out = jax.block_until_ready(hypermlp_forward(x, weight, bias))
    ref = _reference(x, weight, bias)

    assert out.shape == (batch, in_chans, img_size, embed_dim), out.shape
    err = float(jnp.max(jnp.abs(out - ref)))
    # Tolerance covers possible MXU pass-count differences between the Pallas
    # kernel and the XLA einsum reference (both f32-stored, f32-accumulated);
    # a real indexing/tiling bug would produce O(0.1 - 1) errors.
    assert err < 5e-3, f"max abs err {err}"

    print("KERNEL_OK")
</pallas_src>

<mosaic_0001>
module attributes {stable_mosaic.version = 11 : i64} {
  func.func @_hypermlp_kernel(%arg0: i32, %arg1: memref<128x16xf32, #tpu.memory_space<vmem>>, %arg2: memref<16x32xf32, #tpu.memory_space<vmem>>, %arg3: memref<1x32xf32, #tpu.memory_space<vmem>>, %arg4: memref<128x32xf32, #tpu.memory_space<vmem>>) attributes {dimension_semantics = [#tpu.dimension_semantics<parallel>], iteration_bounds = array<i64: 1>, scalar_prefetch = 0 : i64, scratch_operands = 0 : i64, tpu.core_type = #tpu.core_type<tc>, window_params = [{transform_indices = @transform_0, window_bounds = array<i64: 128, 16>}, {pipeline_mode = #tpu.pipeline_mode<synchronous>, transform_indices = @transform_1, window_bounds = array<i64: 16, 32>}, {pipeline_mode = #tpu.pipeline_mode<synchronous>, transform_indices = @transform_2, window_bounds = array<i64: 1, 32>}, {transform_indices = @transform_3, window_bounds = array<i64: 128, 32>}]} {
    %c0 = arith.constant 0 : index
    %c0_0 = arith.constant 0 : index
    %0 = vector.load %arg1[%c0, %c0_0] : memref<128x16xf32, #tpu.memory_space<vmem>>, vector<128x16xf32>
    %c0_1 = arith.constant 0 : index
    %c0_2 = arith.constant 0 : index
    %1 = vector.load %arg2[%c0_1, %c0_2] : memref<16x32xf32, #tpu.memory_space<vmem>>, vector<16x32xf32>
    %cst = arith.constant dense<0.000000e+00> : vector<128x32xf32>
    %2 = tpu.matmul %0, %1, %cst {dimension_numbers = #tpu.dot_dimension_numbers<[1], [0], [0], [1], [0, 0, 1, 1], [], []>} : vector<128x16xf32>, vector<16x32xf32>, vector<128x32xf32> -> vector<128x32xf32>
    %c0_3 = arith.constant 0 : index
    %c0_4 = arith.constant 0 : index
    %3 = vector.load %arg3[%c0_3, %c0_4] : memref<1x32xf32, #tpu.memory_space<vmem>>, vector<1x32xf32>
    %4 = vector.broadcast %3 : vector<1x32xf32> to vector<128x32xf32>
    %5 = arith.addf %2, %4 : vector<128x32xf32>
    %cst_5 = arith.constant 5.000000e-01 : f32
    %6 = vector.broadcast %cst_5 : f32 to vector<128x32xf32>
    %7 = arith.mulf %6, %5 : vector<128x32xf32>
    %cst_6 = arith.constant 0.707106769 : f32
    %8 = vector.broadcast %cst_6 : f32 to vector<128x32xf32>
    %9 = arith.mulf %5, %8 : vector<128x32xf32>
    %10 = math.erf %9 : vector<128x32xf32>
    %cst_7 = arith.constant 1.000000e+00 : f32
    %11 = vector.broadcast %cst_7 : f32 to vector<128x32xf32>
    %12 = arith.addf %11, %10 : vector<128x32xf32>
    %13 = arith.mulf %7, %12 : vector<128x32xf32>
    %c0_8 = arith.constant 0 : index
    %c0_9 = arith.constant 0 : index
    %14 = vector.load %arg4[%c0_8, %c0_9] : memref<128x32xf32, #tpu.memory_space<vmem>>, vector<128x32xf32>
    tpu.vector_store %arg4[%c0_8, %c0_9], %13 {strides = array<i32>} : memref<128x32xf32, #tpu.memory_space<vmem>>, vector<128x32xf32>,
    return
  }
  func.func @transform_0(%arg0: i32) -> (i32, i32) {
    %c0_i32 = arith.constant 0 : i32
    %c0_i32_0 = arith.constant 0 : i32
    return %arg0, %c0_i32 : i32, i32
  }
  func.func @transform_1(%arg0: i32) -> (i32, i32) {
    %c0_i32 = arith.constant 0 : i32
    %c0_i32_0 = arith.constant 0 : i32
    %c0_i32_1 = arith.constant 0 : i32
    return %c0_i32, %c0_i32_0 : i32, i32
  }
  func.func @transform_2(%arg0: i32) -> (i32, i32) {
    %c0_i32 = arith.constant 0 : i32
    %c0_i32_0 = arith.constant 0 : i32
    %c0_i32_1 = arith.constant 0 : i32
    return %c0_i32, %c0_i32_0 : i32, i32
  }
  func.func @transform_3(%arg0: i32) -> (i32, i32) {
    %c0_i32 = arith.constant 0 : i32
    %c0_i32_0 = arith.constant 0 : i32
    return %arg0, %c0_i32 : i32, i32
  }
}

</mosaic_0001>

<llo_original>
// kernel: tpu_custom_call.1
$region0: #{tpu_custom_call.1}
  #allocation0 [shape = 'u32[]', space=smem, size = 0x4, offset = 0x4, fixed_abs, tag = 'smem constant byte address 0x4 - core index']
  #allocation1 [shape = 'u32[144,128]{1,0:T(1,128)}', space=vmem, size = 0x12000, scoped, tag = 'internal scratch']
  %s0 = inlined_call_operand.vmem [shape: f32[128,16], index: 0, kind: input, shape index: {}]
  %s1 = inlined_call_operand.vmem [shape: f32[16,32], index: 1, kind: input, shape index: {}]
  %s2 = inlined_call_operand.vmem [shape: f32[1,32], index: 2, kind: input, shape index: {}]
  %s3 = inlined_call_operand.vmem [shape: f32[128,32], index: 3, kind: output, shape index: {}]
  %s4 = sld [smem:[#allocation0]]
  $region22: #{tpu_custom_call.1} parent=0
    _
  %s6 = ssub.s32 1, %s4
  %s7 = scalar_select 0, %s6, %s4
  // Predicated region
  $region2: #{tpu_custom_call.1} parent=0 // pred_check
    _
  $region3: #{tpu_custom_call.1} parent=0 // pred_check_branch
    %9 = sbr.rel (0) target = $region5
  $region4: #{tpu_custom_call.1} parent=0 // pred_region
    _
  $region5: #{tpu_custom_call.1} parent=0 // pred_fallthru
    _
  // Predicated region
  $region6: #{tpu_custom_call.1} parent=0 // pred_check
    _
  $region7: #{tpu_custom_call.1} parent=0 // pred_check_branch
    %11 = sbr.rel (0) target = $region9
  $region8: #{tpu_custom_call.1} parent=0 // pred_region
    _
  $region9: #{tpu_custom_call.1} parent=0 // pred_fallthru
    _
  // Predicated region
  $region10: #{tpu_custom_call.1} parent=0 // pred_check
    _
  $region11: #{tpu_custom_call.1} parent=0 // pred_check_branch
    %13 = sbr.rel (0) target = $region13
  $region12: #{tpu_custom_call.1} parent=0 // pred_region
    _
  $region13: #{tpu_custom_call.1} parent=0 // pred_fallthru
    _
  %v14 = vld [vmem:[%s0] sm:$0xff]
  %v15 = vld [vmem:[%s0 + $0x8] sm:$0xff]
  %v16 = vld [vmem:[%s0 + $0x10] sm:$0xff]
  %v17 = vld [vmem:[%s0 + $0x18] sm:$0xff]
  %v18 = vld [vmem:[%s0 + $0x20] sm:$0xff]
  %v19 = vld [vmem:[%s0 + $0x28] sm:$0xff]
  %v20 = vld [vmem:[%s0 + $0x30] sm:$0xff]
  %v21 = vld [vmem:[%s0 + $0x38] sm:$0xff]
  %v22 = vld [vmem:[%s0 + $0x40] sm:$0xff]
  %v23 = vld [vmem:[%s0 + $0x48] sm:$0xff]
  %v24 = vld [vmem:[%s0 + $0x50] sm:$0xff]
  %v25 = vld [vmem:[%s0 + $0x58] sm:$0xff]
  %v26 = vld [vmem:[%s0 + $0x60] sm:$0xff]
  %v27 = vld [vmem:[%s0 + $0x68] sm:$0xff]
  %v28 = vld [vmem:[%s0 + $0x70] sm:$0xff]
  %v29 = vld [vmem:[%s0 + $0x78] sm:$0xff]
  %v30 = vld [vmem:[%s1] sm:$0xff]
  %v31 = vld [vmem:[%s1 + $0x8] sm:$0xff]
  %v32 = vld [vmem:[%s2] sm:$0x1]
  %v34 = vlaneseq
  %v35 = vshrl.u32 %v34, 7
  %v36 = vsub.s32 0, %v35
  %v37 = vrot.slane %v32, %v36
  %vm39 = vcmask 130048
  %v41 = vsel %vm39, %v14, 0
  %v44 = vsel %vm39, %v15, 0
  %v47 = vsel %vm39, %v16, 0
  %v50 = vsel %vm39, %v17, 0
  %v53 = vsel %vm39, %v18, 0
  %v56 = vsel %vm39, %v19, 0
  %v59 = vsel %vm39, %v20, 0
  %v62 = vsel %vm39, %v21, 0
  %v65 = vsel %vm39, %v22, 0
  %v68 = vsel %vm39, %v23, 0
  %v71 = vsel %vm39, %v24, 0
  %v74 = vsel %vm39, %v25, 0
  %v77 = vsel %vm39, %v26, 0
  %v80 = vsel %vm39, %v27, 0
  %v83 = vsel %vm39, %v28, 0
  %v86 = vsel %vm39, %v29, 0
  %88 = vmatprep.subr.mxu0 0.0
  %89 = vmatpush1.msra.mxu0 %v30
  %90 = vmatprep.subr.mxu0 0.0
  %91 = vmatpush1.msra.mxu0 %v31
  %92 = vmatprep.subr.mxu0 0.0
  %93 = vmatpush1.msra.mxu0 0.0
  %94 = vmatprep.subr.mxu0 0.0
  %95 = vmatpush1.msra.mxu0 0.0
  %96 = vmatprep.subr.mxu0 0.0
  %97 = vmatpush1.msra.mxu0 0.0
  %98 = vmatprep.subr.mxu0 0.0
  %99 = vmatpush1.msra.mxu0 0.0
  %100 = vmatprep.subr.mxu0 0.0
  %101 = vmatpush1.msra.mxu0 0.0
  %102 = vmatprep.subr.mxu0 0.0
  %103 = vmatpush1.msra.mxu0 0.0
  %104 = vmatprep.subr.mxu0 0.0
  %105 = vmatpush1.msra.mxu0 0.0
  %106 = vmatprep.subr.mxu0 0.0
  %107 = vmatpush1.msra.mxu0 0.0
  %108 = vmatprep.subr.mxu0 0.0
  %109 = vmatpush1.msra.mxu0 0.0
  %110 = vmatprep.subr.mxu0 0.0
  %111 = vmatpush1.msra.mxu0 0.0
  %112 = vmatprep.subr.mxu0 0.0
  %113 = vmatpush1.msra.mxu0 0.0
  %114 = vmatprep.subr.mxu0 0.0
  %115 = vmatpush1.msra.mxu0 0.0
  %116 = vmatprep.subr.mxu0 0.0
  %117 = vmatpush1.msra.mxu0 0.0
  %118 = vmatprep.subr.mxu0 0.0
  %119 = vmatpush1.msra.mxu0 0.0
  %120 = vmatprep.subr.mxu0 0.0
  %121 = vmatpush1.msra.mxu0 0.0
  %122 = vmatprep.subr.mxu0 0.0
  %123 = vmatpush1.msra.mxu0 0.0
  %124 = vmatprep.subr.mxu0 0.0
  %125 = vmatpush1.msra.mxu0 0.0
  %126 = vmatprep.subr.mxu0 0.0
  %127 = vmatpush1.msra.mxu0 0.0
  %128 = vmatprep.subr.mxu0 0.0
  %129 = vmatpush1.msra.mxu0 0.0
  %130 = vmatprep.subr.mxu0 0.0
  %131 = vmatpush1.msra.mxu0 0.0
  %132 = vmatprep.subr.mxu0 0.0
  %133 = vmatpush1.msra.mxu0 0.0
  %134 = vmatprep.subr.mxu0 0.0
  %135 = vmatpush1.msra.mxu0 0.0
  %136 = vmatprep.subr.mxu0 0.0
  %137 = vmatpush1.msra.mxu0 0.0
  %138 = vmatprep.subr.mxu0 0.0
  %139 = vmatpush1.msra.mxu0 0.0
  %140 = vmatprep.subr.mxu0 0.0
  %141 = vmatpush1.msra.mxu0 0.0
  %142 = vmatprep.subr.mxu0 0.0
  %143 = vmatpush1.msra.mxu0 0.0
  %144 = vmatprep.subr.mxu0 0.0
  %145 = vmatpush1.msra.mxu0 0.0
  %146 = vmatprep.subr.mxu0 0.0
  %147 = vmatpush1.msra.mxu0 0.0
  %148 = vmatprep.subr.mxu0 0.0
  %149 = vmatpush1.msra.mxu0 0.0
  %150 = vmatprep.subr.mxu0 0.0
  %151 = vmatpush1.msra.mxu0 0.0
  %152 = vmatprep.mubr.f32.mxu0 0.0
  %153 = vmatmul.mubr.f32.gmra.mrb[0].mxu0 %v41
  %v154 = vpop.f32.mrb[0].mxu0
  %v155 = vadd.f32 %v37, %v154
  %v156 = vpop.f32.mrb[0].mxu0
  %157 = vmatprep.mubr.f32.mxu0 0.0
  %158 = vmatmul.mubr.f32.gmra.mrb[0].mxu0 %v44
  %v159 = vpop.f32.mrb[0].mxu0
  %v160 = vadd.f32 %v37, %v159
  %v161 = vpop.f32.mrb[0].mxu0
  %162 = vmatprep.mubr.f32.mxu0 0.0
  %163 = vmatmul.mubr.f32.gmra.mrb[0].mxu0 %v47
  %v164 = vpop.f32.mrb[0].mxu0
  %v165 = vadd.f32 %v37, %v164
  %v166 = vpop.f32.mrb[0].mxu0
  %167 = vmatprep.mubr.f32.mxu0 0.0
  %168 = vmatmul.mubr.f32.gmra.mrb[0].mxu0 %v50
  %v169 = vpop.f32.mrb[0].mxu0
  %v170 = vadd.f32 %v37, %v169
  %v171 = vpop.f32.mrb[0].mxu0
  %172 = vmatprep.mubr.f32.mxu0 0.0
  %173 = vmatmul.mubr.f32.gmra.mrb[0].mxu0 %v53
  %v174 = vpop.f32.mrb[0].mxu0
  %v175 = vadd.f32 %v37, %v174
  %v176 = vpop.f32.mrb[0].mxu0
  %177 = vmatprep.mubr.f32.mxu0 0.0
  %178 = vmatmul.mubr.f32.gmra.mrb[0].mxu0 %v56
  %v179 = vpop.f32.mrb[0].mxu0
  %v180 = vadd.f32 %v37, %v179
  %v181 = vpop.f32.mrb[0].mxu0
  %182 = vmatprep.mubr.f32.mxu0 0.0
  %183 = vmatmul.mubr.f32.gmra.mrb[0].mxu0 %v59
  %v184 = vpop.f32.mrb[0].mxu0
  %v185 = vadd.f32 %v37, %v184
  %v186 = vpop.f32.mrb[0].mxu0
  %187 = vmatprep.mubr.f32.mxu0 0.0
  %188 = vmatmul.mubr.f32.gmra.mrb[0].mxu0 %v62
  %v189 = vpop.f32.mrb[0].mxu0
  %v190 = vadd.f32 %v37, %v189
  %v191 = vpop.f32.mrb[0].mxu0
  %192 = vmatprep.mubr.f32.mxu0 0.0
  %193 = vmatmul.mubr.f32.gmra.mrb[0].mxu0 %v65
  %v194 = vpop.f32.mrb[0].mxu0
  %v195 = vadd.f32 %v37, %v194
  %v196 = vpop.f32.mrb[0].mxu0
  %197 = vmatprep.mubr.f32.mxu0 0.0
  %198 = vmatmul.mubr.f32.gmra.mrb[0].mxu0 %v68
  %v199 = vpop.f32.mrb[0].mxu0
  %v200 = vadd.f32 %v37, %v199
  %v201 = vpop.f32.mrb[0].mxu0
  %202 = vmatprep.mubr.f32.mxu0 0.0
  %203 = vmatmul.mubr.f32.gmra.mrb[0].mxu0 %v71
  %v204 = vpop.f32.mrb[0].mxu0
  %v205 = vadd.f32 %v37, %v204
  %v206 = vpop.f32.mrb[0].mxu0
  %207 = vmatprep.mubr.f32.mxu0 0.0
  %208 = vmatmul.mubr.f32.gmra.mrb[0].mxu0 %v74
  %v209 = vpop.f32.mrb[0].mxu0
  %v210 = vadd.f32 %v37, %v209
  %v211 = vpop.f32.mrb[0].mxu0
  %212 = vmatprep.mubr.f32.mxu0 0.0
  %213 = vmatmul.mubr.f32.gmra.mrb[0].mxu0 %v77
  %v214 = vpop.f32.mrb[0].mxu0
  %v215 = vadd.f32 %v37, %v214
  %v216 = vpop.f32.mrb[0].mxu0
  %217 = vmatprep.mubr.f32.mxu0 0.0
  %218 = vmatmul.mubr.f32.gmra.mrb[0].mxu0 %v80
  %v219 = vpop.f32.mrb[0].mxu0
  %v220 = vadd.f32 %v37, %v219
  %v221 = vpop.f32.mrb[0].mxu0
  %222 = vmatprep.mubr.f32.mxu0 0.0
  %223 = vmatmul.mubr.f32.gmra.mrb[0].mxu0 %v83
  %v224 = vpop.f32.mrb[0].mxu0
  %v225 = vadd.f32 %v37, %v224
  %v226 = vpop.f32.mrb[0].mxu0
  %227 = vmatprep.mubr.f32.mxu0 0.0
  %228 = vmatmul.mubr.f32.gmra.mrb[0].mxu0 %v86
  %v229 = vpop.f32.mrb[0].mxu0
  %v230 = vadd.f32 %v37, %v229
  %v231 = vpop.f32.mrb[0].mxu0
  %232 = vdwg.mxu0
  %v233 = vmul.f32 %v155, 0.5
  %v234 = vmul.f32 %v160, 0.5
  %v235 = vmul.f32 %v165, 0.5
  %v236 = vmul.f32 %v170, 0.5
  %v237 = vmul.f32 %v175, 0.5
  %v238 = vmul.f32 %v180, 0.5
  %v239 = vmul.f32 %v185, 0.5
  %v240 = vmul.f32 %v190, 0.5
  %v241 = vmul.f32 %v195, 0.5
  %v242 = vmul.f32 %v200, 0.5
  %v243 = vmul.f32 %v205, 0.5
  %v244 = vmul.f32 %v210, 0.5
  %v245 = vmul.f32 %v215, 0.5
  %v246 = vmul.f32 %v220, 0.5
  %v247 = vmul.f32 %v225, 0.5
  %v248 = vmul.f32 %v230, 0.5
  %v249 = vmul.f32 %v155, 0.70710677
  %v250 = vmul.f32 %v160, 0.70710677
  %v251 = vmul.f32 %v165, 0.70710677
  %v252 = vmul.f32 %v170, 0.70710677
  %v253 = vmul.f32 %v175, 0.70710677
  %v254 = vmul.f32 %v180, 0.70710677
  %v255 = vmul.f32 %v185, 0.70710677
  %v256 = vmul.f32 %v190, 0.70710677
  %v257 = vmul.f32 %v195, 0.70710677
  %v258 = vmul.f32 %v200, 0.70710677
  %v259 = vmul.f32 %v205, 0.70710677
  %v260 = vmul.f32 %v210, 0.70710677
  %v261 = vmul.f32 %v215, 0.70710677
  %v262 = vmul.f32 %v220, 0.70710677
  %v263 = vmul.f32 %v225, 0.70710677
  %v264 = vmul.f32 %v230, 0.70710677
  %v265 = verf.f32.pop %v249
  %v266 = verf.f32.pop %v250
  %v267 = verf.f32.pop %v251
  %v268 = verf.f32.pop %v252
  %v269 = verf.f32.pop %v253
  %v270 = verf.f32.pop %v254
  %v271 = verf.f32.pop %v255
  %v272 = verf.f32.pop %v256
  %v273 = verf.f32.pop %v257
  %v274 = verf.f32.pop %v258
  %v275 = verf.f32.pop %v259
  %v276 = verf.f32.pop %v260
  %v277 = verf.f32.pop %v261
  %v278 = verf.f32.pop %v262
  %v279 = verf.f32.pop %v263
  %v280 = verf.f32.pop %v264
  %v281 = vadd.f32 %v265, 1.0
  %v282 = vadd.f32 %v266, 1.0
  %v283 = vadd.f32 %v267, 1.0
  %v284 = vadd.f32 %v268, 1.0
  %v285 = vadd.f32 %v269, 1.0
  %v286 = vadd.f32 %v270, 1.0
  %v287 = vadd.f32 %v271, 1.0
  %v288 = vadd.f32 %v272, 1.0
  %v289 = vadd.f32 %v273, 1.0
  %v290 = vadd.f32 %v274, 1.0
  %v291 = vadd.f32 %v275, 1.0
  %v292 = vadd.f32 %v276, 1.0
  %v293 = vadd.f32 %v277, 1.0
  %v294 = vadd.f32 %v278, 1.0
  %v295 = vadd.f32 %v279, 1.0
  %v296 = vadd.f32 %v280, 1.0
  %v297 = vmul.f32 %v233, %v281
  %v298 = vmul.f32 %v234, %v282
  %v299 = vmul.f32 %v235, %v283
  %v300 = vmul.f32 %v236, %v284
  %v301 = vmul.f32 %v237, %v285
  %v302 = vmul.f32 %v238, %v286
  %v303 = vmul.f32 %v239, %v287
  %v304 = vmul.f32 %v240, %v288
  %v305 = vmul.f32 %v241, %v289
  %v306 = vmul.f32 %v242, %v290
  %v307 = vmul.f32 %v243, %v291
  %v308 = vmul.f32 %v244, %v292
  %v309 = vmul.f32 %v245, %v293
  %v310 = vmul.f32 %v246, %v294
  %v311 = vmul.f32 %v247, %v295
  %v312 = vmul.f32 %v248, %v296
  %vm313 = vcmask 261120
  %314 = vst.msk [vmem:[%s3] sm:$0xff] %vm313, %v297
  %315 = vst.msk [vmem:[%s3 + $0x8] sm:$0xff] %vm313, %v298
  %316 = vst.msk [vmem:[%s3 + $0x10] sm:$0xff] %vm313, %v299
  %317 = vst.msk [vmem:[%s3 + $0x18] sm:$0xff] %vm313, %v300
  %318 = vst.msk [vmem:[%s3 + $0x20] sm:$0xff] %vm313, %v301
  %319 = vst.msk [vmem:[%s3 + $0x28] sm:$0xff] %vm313, %v302
  %320 = vst.msk [vmem:[%s3 + $0x30] sm:$0xff] %vm313, %v303
  %321 = vst.msk [vmem:[%s3 + $0x38] sm:$0xff] %vm313, %v304
  %322 = vst.msk [vmem:[%s3 + $0x40] sm:$0xff] %vm313, %v305
  %323 = vst.msk [vmem:[%s3 + $0x48] sm:$0xff] %vm313, %v306
  %324 = vst.msk [vmem:[%s3 + $0x50] sm:$0xff] %vm313, %v307
  %325 = vst.msk [vmem:[%s3 + $0x58] sm:$0xff] %vm313, %v308
  %326 = vst.msk [vmem:[%s3 + $0x60] sm:$0xff] %vm313, %v309
  %327 = vst.msk [vmem:[%s3 + $0x68] sm:$0xff] %vm313, %v310
  %328 = vst.msk [vmem:[%s3 + $0x70] sm:$0xff] %vm313, %v311
  %329 = vst.msk [vmem:[%s3 + $0x78] sm:$0xff] %vm313, %v312
  // Predicated region
  $region14: #{tpu_custom_call.1} parent=0 // pred_check
    _
  $region15: #{tpu_custom_call.1} parent=0 // pred_check_branch
    %331 = sbr.rel (0) target = $region17
  $region16: #{tpu_custom_call.1} parent=0 // pred_region
    _
  $region17: #{tpu_custom_call.1} parent=0 // pred_fallthru
    _
  // Predicated region
  $region18: #{tpu_custom_call.1} parent=0 // pred_check
    _
  $region19: #{tpu_custom_call.1} parent=0 // pred_check_branch
    %333 = sbr.rel (0) target = $region21
  $region20: #{tpu_custom_call.1} parent=0 // pred_region
    _
  $region21: #{tpu_custom_call.1} parent=0 // pred_fallthru
    _

</llo_original>
